<compile_context>
chip_gen: v5e
topology: v5e:2x2
jax: 0.10.0
libtpu: 0.0.40
codegen_flags: <defaults>
</compile_context>

<pallas_src>
import functools
from collections import Counter

import jax
import jax.numpy as jnp
from jax.experimental import pallas as pl
from jax.experimental.pallas import tpu as pltpu


# ----------------------------------------------------------------------------
# generation-aware tiling knobs
# ----------------------------------------------------------------------------
def _device_kind():
    try:
        return jax.devices()[0].device_kind.lower()
    except Exception:
        return ""


_KIND = _device_kind()
_IS_V7 = "v7" in _KIND
# v7x: 2 TensorCores -> keep >=2 grid steps so "parallel" splits rows across cores,
#      and budget tiles against the smaller 64 MiB VMEM (32 MiB scoped default).
# v5e/v6e: single TC -> the grid is a serial loop; no forced 2nd step, bigger tiles.
_MIN_STEPS = 2 if _IS_V7 else 1
_MAX_TILE_ROWS = 512 if _IS_V7 else 1024
_VMEM_LIMIT = (32 if _IS_V7 else 64) * 1024 * 1024


def _round_up(x, m):
    return ((x + m - 1) // m) * m


def _split(n, unit, min_steps, max_rows):
    """Split n into `steps` equal chunks of `chunk` (chunk*unit rows per grid step).
    Chunks always divide n exactly -> no wrapper-side pad/slice round trips."""
    for steps in range(max(1, min_steps), n + 1):
        if n % steps:
            continue
        chunk = n // steps
        rows = chunk * unit
        if rows <= max_rows and (rows % 8 == 0 or steps == 1):
            return chunk, steps
    return n, 1          # full-extent block is always a legal BlockSpec


def _cparams(ndims=1):
    return pltpu.CompilerParams(dimension_semantics=("parallel",) * ndims,
                                vmem_limit_bytes=_VMEM_LIMIT)


# ----------------------------------------------------------------------------
# Pallas kernels
# ----------------------------------------------------------------------------
def _matmul_bias_kernel(x_ref, w_ref, b_ref, o_ref):
    # x: (TM, Cin) f32   w: (Cin, Cout) bf16   b: (1, Cout) f32   o: (TM, Cout) f32
    acc = jnp.dot(x_ref[...].astype(jnp.bfloat16), w_ref[...],
                  preferred_element_type=jnp.float32)
    o_ref[...] = (acc + b_ref[...]).astype(o_ref.dtype)


def _fuse_occ_kernel(feat_ref, sw_ref, occw_ref, bias_ref, o_ref, *, n_agents, c, fout):
    # feat: (A, TM, C) f32   sw/occw: (1, C) f32   bias: (2,) f32 in SMEM
    # o: (TM, FOUT) f32 with fused in lanes [0,C), per-agent occ in lanes [C,C+A).
    feats = feat_ref[...]                                        # f32 VPU work (v5e-safe)
    sw = sw_ref[...][None]                                       # (1, 1, C)
    # per-agent per-pixel fusion score: VPU multiply + XLU lane reduce
    scores = jnp.sum(feats * sw, axis=-1, keepdims=True) + bias_ref[0]   # (A, TM, 1)
    # softmax across agents (exact f32 divide for parity with the f32 reference)
    m = jnp.max(scores, axis=0, keepdims=True)
    e = jnp.exp(scores - m)
    wgt = e / jnp.sum(e, axis=0, keepdims=True)
    fused = jnp.sum(wgt * feats, axis=0)                         # (TM, C)

    # per-agent single-scale occupancy head (1x1 conv C -> 1); the agent stack is
    # read from HBM exactly once for both fusion and occupancy.
    occw = occw_ref[...]                                         # (1, C)
    occ_cols = [jnp.sum(feats[i] * occw, axis=-1, keepdims=True) + bias_ref[1]
                for i in range(n_agents)]

    pieces = [fused] + occ_cols
    pad = fout - (c + n_agents)
    if pad:
        pieces.append(jnp.zeros((fused.shape[0], pad), jnp.float32))
    o_ref[...] = jnp.concatenate(pieces, axis=-1).astype(o_ref.dtype)   # one unmasked store


def _shrink_heads_kernel(xp_ref, wtap_ref, sb_ref, hw_ref, hb_ref, o_ref,
                         *, th, w, c, kpad):
    # xp: (H+2, W+2, C) f32 halo-padded fused map (VMEM resident across steps)
    # wtap: (9, C, C) bf16   sb: (1, C) f32   hw: (C, KPAD) bf16   hb: (1, KPAD) f32
    # o: (TH*W, KPAD) f32 lane-dense.
    h0 = pl.program_id(0) * th
    acc = jnp.zeros((th * w, c), jnp.float32)
    for t in range(9):                                  # in-kernel 9-tap accumulation
        ky, kx = divmod(t, 3)
        tap = xp_ref[pl.ds(h0 + ky, th), pl.ds(kx, w), :]        # (TH, W, C)
        tap = tap.reshape(th * w, c).astype(jnp.bfloat16)
        acc = acc + jnp.dot(tap, wtap_ref[t], preferred_element_type=jnp.float32)
    shrunk = jnp.maximum(acc + sb_ref[...], 0.0)        # DownsampleConv = Conv3x3 + ReLU
    heads = jnp.dot(shrunk.astype(jnp.bfloat16), hw_ref[...],
                    preferred_element_type=jnp.float32) + hb_ref[...]
    o_ref[...] = heads.astype(o_ref.dtype)


# ----------------------------------------------------------------------------
# Kernel wrappers (all operate on channels-last rows)
# ----------------------------------------------------------------------------
def _rows_matmul_bias(x_rows, w_t_bf16, b_row):
    rows, cin = x_rows.shape
    cout = w_t_bf16.shape[1]
    tm, nsteps = _split(rows, 1, _MIN_STEPS, _MAX_TILE_ROWS)
    return pl.pallas_call(
        _matmul_bias_kernel,
        out_shape=jax.ShapeDtypeStruct((rows, cout), x_rows.dtype),
        grid=(nsteps,),
        in_specs=[pl.BlockSpec((tm, cin), lambda i: (i, 0)),
                  pl.BlockSpec((cin, cout), lambda i: (0, 0)),
                  pl.BlockSpec((1, cout), lambda i: (0, 0))],
        out_specs=pl.BlockSpec((tm, cout), lambda i: (i, 0)),
        compiler_params=_cparams(1),
        cost_estimate=pl.CostEstimate(
            flops=2 * rows * cin * cout,
            transcendentals=0,
            bytes_accessed=4 * rows * cin + 2 * cin * cout + 4 * cout + 4 * rows * cout),
    )(x_rows, w_t_bf16, b_row)


def fuse_and_occ(stack_rows, score_w_row, occ_w_row, fuse_bias, c):
    """Collaborative weighted fusion + per-agent occupancy head in one kernel.
    stack_rows: (A, rows, C) -> fused (rows, C), occ (rows, A)."""
    a, rows, _ = stack_rows.shape
    fout = _round_up(c + a, 128)
    tm, nsteps = _split(rows, 1, _MIN_STEPS, _MAX_TILE_ROWS)
    kern = functools.partial(_fuse_occ_kernel, n_agents=a, c=c, fout=fout)
    out = pl.pallas_call(
        kern,
        out_shape=jax.ShapeDtypeStruct((rows, fout), jnp.float32),
        grid=(nsteps,),
        in_specs=[pl.BlockSpec((a, tm, c), lambda i: (0, i, 0)),
                  pl.BlockSpec((1, c), lambda i: (0, 0)),
                  pl.BlockSpec((1, c), lambda i: (0, 0)),
                  pl.BlockSpec(memory_space=pltpu.MemorySpace.SMEM)],
        out_specs=pl.BlockSpec((tm, fout), lambda i: (i, 0)),
        compiler_params=_cparams(1),
        cost_estimate=pl.CostEstimate(
            flops=8 * a * rows * c,
            transcendentals=2 * a * rows,
            bytes_accessed=4 * (a * rows * c + 2 * c + rows * fout) + 8),
    )(stack_rows, score_w_row, occ_w_row, fuse_bias)
    return out[:, :c], out[:, c:c + a]


def shrink_and_heads(fused_rows, h, w, c, shrink_taps, shrink_brow, head_w_pad, head_b_pad):
    """3x3 'same' shrink conv + ReLU, fused with the concatenated cls|reg|dir 1x1
    heads.  The halo-padded map is read from HBM once and stays VMEM-resident; the
    9 taps are accumulated in-kernel.  Returns (H*W, KPAD) lane-dense rows."""
    kpad = head_w_pad.shape[1]
    xp = jnp.pad(fused_rows.reshape(h, w, c), ((1, 1), (1, 1), (0, 0)))
    th, nsteps = _split(h, w, _MIN_STEPS, _MAX_TILE_ROWS)
    kern = functools.partial(_shrink_heads_kernel, th=th, w=w, c=c, kpad=kpad)
    # TODO(synk): for very large BEV maps switch the resident halo-padded map to a
    #             halo-tiled manual DMA so the per-step VMEM footprint stays bounded.
    return pl.pallas_call(
        kern,
        out_shape=jax.ShapeDtypeStruct((h * w, kpad), jnp.float32),
        grid=(nsteps,),
        in_specs=[pl.BlockSpec((h + 2, w + 2, c), lambda i: (0, 0, 0)),
                  pl.BlockSpec((9, c, c), lambda i: (0, 0, 0)),
                  pl.BlockSpec((1, c), lambda i: (0, 0)),
                  pl.BlockSpec((c, kpad), lambda i: (0, 0)),
                  pl.BlockSpec((1, kpad), lambda i: (0, 0))],
        out_specs=pl.BlockSpec((th * w, kpad), lambda i: (i, 0)),
        compiler_params=_cparams(1),
        cost_estimate=pl.CostEstimate(
            flops=2 * h * w * (9 * c * c + c * kpad),
            transcendentals=0,
            bytes_accessed=4 * (h + 2) * (w + 2) * c + 2 * (9 * c * c + c * kpad)
                           + 4 * (c + kpad) + 4 * h * w * kpad),
    )(xp, shrink_taps, shrink_brow, head_w_pad, head_b_pad)


# ----------------------------------------------------------------------------
# Parameter init (deterministic, synthetic — shapes follow the module __init__).
# All kernel-ready weight plumbing (transposes, pads, concats) is hoisted here.
# ----------------------------------------------------------------------------
def init_params(key, modality_name_list, C, P, anchor_num, num_bins):
    params = {}
    K = (1 + 7 + num_bins) * anchor_num
    KPAD = _round_up(K, 128)
    for m in modality_name_list:
        key, *ks = jax.random.split(key, 10)

        def nrm(k, shape, scale=0.05):
            return scale * jax.random.normal(k, shape, dtype=jnp.float32)

        adapter_w = nrm(ks[0], (P, C));  adapter_b = jnp.zeros((P,), jnp.float32)
        reverter_w = nrm(ks[1], (C, P)); reverter_b = jnp.zeros((C,), jnp.float32)
        score_w = nrm(ks[2], (1, C));    score_b = jnp.zeros((1,), jnp.float32)
        occ_w = nrm(ks[3], (1, C));      occ_b = jnp.zeros((1,), jnp.float32)
        shrink_w = nrm(ks[4], (C, C, 3, 3)); shrink_b = jnp.zeros((C,), jnp.float32)
        cls_w = nrm(ks[5], (anchor_num, C)); cls_b = jnp.zeros((anchor_num,), jnp.float32)
        reg_w = nrm(ks[6], (7 * anchor_num, C)); reg_b = jnp.zeros((7 * anchor_num,), jnp.float32)
        dir_w = nrm(ks[7], (num_bins * anchor_num, C))
        dir_b = jnp.zeros((num_bins * anchor_num,), jnp.float32)

        head_w = jnp.concatenate([cls_w, reg_w, dir_w], axis=0)        # (K, C)
        head_b = jnp.concatenate([cls_b, reg_b, dir_b], axis=0)        # (K,)

        params[m] = {
            'anchor_num': anchor_num, 'K': K,
            # bf16 matmul operands (MXU fast path), f32 biases / accumulation.
            'adapter_wt': jnp.transpose(adapter_w).astype(jnp.bfloat16),     # (C, P)
            'adapter_brow': adapter_b.reshape(1, P),
            'reverter_wt': jnp.transpose(reverter_w).astype(jnp.bfloat16),   # (P, C)
            'reverter_brow': reverter_b.reshape(1, C),
            # fusion score / occupancy weights stay f32 (VPU/EUP work, v5e-safe).
            'score_w_row': score_w, 'occ_w_row': occ_w,
            'fuse_bias': jnp.concatenate([score_b, occ_b]),                  # (2,) -> SMEM
            # 3x3 shrink conv as 9 per-tap (Cin, Cout) matrices, (ky,kx)-major.
            'shrink_taps': jnp.transpose(shrink_w, (2, 3, 1, 0))
                              .reshape(9, C, C).astype(jnp.bfloat16),
            'shrink_brow': shrink_b.reshape(1, C),
            # cls|reg|dir heads concatenated, Cout zero-padded to 128 lanes.
            'head_w_pad': jnp.pad(jnp.transpose(head_w),
                                  ((0, 0), (0, KPAD - K))).astype(jnp.bfloat16),
            'head_b_pad': jnp.pad(head_b, (0, KPAD - K)).reshape(1, KPAD),
        }
    return params


# ----------------------------------------------------------------------------
# Forward pass mirroring HeterTaskPyramidAdapterCollab.forward
# ----------------------------------------------------------------------------
def heter_task_pyramid_adapter_collab_forward(params, data_dict, modality_name_list):
    agent_modality_list = data_dict['agent_modality_list']
    modality_feature_dict = dict(data_dict['modality_feature_dict'])
    # TODO(synk): per-modality encoder / ResNetBEVBackbone / AlignNet are external
    #             config-driven modules; inputs here are the post-aligner BEV features.
    # TODO(synk): camera CenterCrop + depth supervision omitted (all modalities 'lidar').
    output_dict = [{'pyramid': 'collab'} for _ in agent_modality_list]
    modality_count_dict = Counter(agent_modality_list)
    present = [m for m in modality_name_list if m in modality_count_dict]

    # --- single NCHW -> channels-last rows conversion at the module boundary ---
    feat_rows, shapes = {}, {}
    for m in present:
        x = modality_feature_dict[m]                       # (N_m, C, H, W)
        n, c, h, w = x.shape
        shapes[m] = (n, c, h, w)
        feat_rows[m] = jnp.transpose(x, (0, 2, 3, 1)).reshape(n, h * w, c)

    # Adapter (1x1 conv ego -> protocol): one batched matmul per present modality.
    proto_rows = {}
    for m in present:
        p = params[m]
        n, c, h, w = shapes[m]
        rows = feat_rows[m].reshape(n * h * w, c)
        pr = _rows_matmul_bias(rows, p['adapter_wt'], p['adapter_brow'])
        proto_rows[m] = pr.reshape(n, h * w, -1)

    # Reverter (1x1 conv protocol -> ego): one batched matmul per ego modality over
    # ALL other modalities' protocol features (concatenated along rows), then split.
    cur_feature_rows = {}
    for cur in present:
        p = params[cur]
        cur_feature_rows[cur] = {cur: feat_rows[cur]}      # cur == src: raw ego features
        srcs = [s for s in present if s != cur]
        if srcs:
            cat = jnp.concatenate(
                [proto_rows[s].reshape(-1, proto_rows[s].shape[-1]) for s in srcs], axis=0)
            rev = _rows_matmul_bias(cat, p['reverter_wt'], p['reverter_brow'])
            off = 0
            for s in srcs:
                n_s, hw_s, _ = proto_rows[s].shape
                cur_feature_rows[cur][s] = rev[off:off + n_s * hw_s].reshape(n_s, hw_s, -1)
                off += n_s * hw_s

    # Per ego modality: assemble the agent stack, run fusion+occ -> shrink+heads ONCE,
    # broadcast to every agent of that modality.
    for modality_name in present:
        p = params[modality_name]
        n, c, h, w = shapes[modality_name]
        counting = {m: 0 for m in modality_name_list}
        feat_list = []
        for m in agent_modality_list:
            feat_list.append(cur_feature_rows[modality_name][m][counting[m]])
            counting[m] += 1
        stack = jnp.stack(feat_list)                       # (A, H*W, C) channels-last
        a = stack.shape[0]

        # self.compress == False in this config -> NaiveCompressor skipped.
        # TODO(synk): PyramidFusion's multiscale resnet stages and the per-agent
        #             affine grid_sample warp are skipped (identity pairwise_t_matrix,
        #             single record) -> fused/heads identical for every agent of this
        #             modality, so they are computed once and reused.
        fused_rows, occ_rows = fuse_and_occ(stack, p['score_w_row'], p['occ_w_row'],
                                            p['fuse_bias'], c)
        occ = jnp.transpose(occ_rows.reshape(h, w, a), (2, 0, 1))[:, None]   # (A,1,H,W)

        heads = shrink_and_heads(fused_rows, h, w, c, p['shrink_taps'], p['shrink_brow'],
                                 p['head_w_pad'], p['head_b_pad'])
        anchor_num = p['anchor_num']
        k_total = p['K']

        def _to_nchw(cols):
            return jnp.transpose(cols.reshape(1, h, w, -1), (0, 3, 1, 2))

        cls_preds = _to_nchw(heads[:, :anchor_num])
        reg_preds = _to_nchw(heads[:, anchor_num:8 * anchor_num])
        dir_preds = _to_nchw(heads[:, 8 * anchor_num:k_total])

        for agent_idx, m in enumerate(agent_modality_list):
            if m != modality_name:
                continue
            output_dict[agent_idx].update({'cls_preds': cls_preds,
                                           'reg_preds': reg_preds,
                                           'dir_preds': dir_preds,
                                           'occ_single_list': [occ]})
    return output_dict


# ----------------------------------------------------------------------------
# Demo
# ----------------------------------------------------------------------------
if __name__ == "__main__":
    key = jax.random.PRNGKey(0)
    C, P, H, W = 32, 32, 16, 16            # in_head=32, protocol dim=32, BEV 16x16
    anchor_num, num_bins = 2, 2
    modality_name_list = ['m1', 'm2']
    agent_modality_list = ['m1', 'm2', 'm1']    # 3 collaborating agents

    k_param, k_f1, k_f2 = jax.random.split(key, 3)
    params = init_params(k_param, modality_name_list, C, P, anchor_num, num_bins)

    data_dict = {
        'agent_modality_list': agent_modality_list,
        'modality_feature_dict': {
            'm1': jax.random.normal(k_f1, (2, C, H, W), jnp.float32),
            'm2': jax.random.normal(k_f2, (1, C, H, W), jnp.float32),
        },
        'record_len': jnp.array([3], jnp.int32),
        'pairwise_t_matrix': jnp.tile(jnp.eye(4, dtype=jnp.float32), (1, 3, 3, 1, 1)),
    }

    out = heter_task_pyramid_adapter_collab_forward(params, data_dict, modality_name_list)

    arrays = [x for x in jax.tree_util.tree_leaves(out) if isinstance(x, jax.Array)]
    jax.block_until_ready(arrays)

    for agent_idx, m in enumerate(agent_modality_list):
        assert out[agent_idx]['cls_preds'].shape == (1, anchor_num, H, W)
        assert out[agent_idx]['reg_preds'].shape == (1, 7 * anchor_num, H, W)
        assert out[agent_idx]['dir_preds'].shape == (1, num_bins * anchor_num, H, W)
        occ0 = out[agent_idx]['occ_single_list'][0]
        assert occ0.shape == (len(agent_modality_list), 1, H, W)

    print("KERNEL_OK")
</pallas_src>

<mosaic_0001>
module attributes {stable_mosaic.version = 11 : i64} {
  func.func @_matmul_bias_kernel(%arg0: i32, %arg1: memref<512x32xf32, #tpu.memory_space<vmem>>, %arg2: memref<32x32xbf16, #tpu.memory_space<vmem>>, %arg3: memref<1x32xf32, #tpu.memory_space<vmem>>, %arg4: memref<512x32xf32, #tpu.memory_space<vmem>>) attributes {dimension_semantics = [#tpu.dimension_semantics<parallel>], iteration_bounds = array<i64: 1>, scalar_prefetch = 0 : i64, scratch_operands = 0 : i64, tpu.core_type = #tpu.core_type<tc>, window_params = [{transform_indices = @transform_0, window_bounds = array<i64: 512, 32>}, {pipeline_mode = #tpu.pipeline_mode<synchronous>, transform_indices = @transform_1, window_bounds = array<i64: 32, 32>}, {pipeline_mode = #tpu.pipeline_mode<synchronous>, transform_indices = @transform_2, window_bounds = array<i64: 1, 32>}, {transform_indices = @transform_3, window_bounds = array<i64: 512, 32>}]} {
    %c0 = arith.constant 0 : index
    %c0_0 = arith.constant 0 : index
    %0 = vector.load %arg1[%c0, %c0_0] : memref<512x32xf32, #tpu.memory_space<vmem>>, vector<512x32xf32>
    %1 = arith.truncf %0 : vector<512x32xf32> to vector<512x32xbf16>
    %c0_1 = arith.constant 0 : index
    %c0_2 = arith.constant 0 : index
    %2 = vector.load %arg2[%c0_1, %c0_2] : memref<32x32xbf16, #tpu.memory_space<vmem>>, vector<32x32xbf16>
    %cst = arith.constant dense<0.000000e+00> : vector<512x32xf32>
    %3 = tpu.matmul %1, %2, %cst {dimension_numbers = #tpu.dot_dimension_numbers<[1], [0], [0], [1], [0, 0, 1, 1], [], []>} : vector<512x32xbf16>, vector<32x32xbf16>, vector<512x32xf32> -> vector<512x32xf32>
    %c0_3 = arith.constant 0 : index
    %c0_4 = arith.constant 0 : index
    %4 = vector.load %arg3[%c0_3, %c0_4] : memref<1x32xf32, #tpu.memory_space<vmem>>, vector<1x32xf32>
    %5 = vector.broadcast %4 : vector<1x32xf32> to vector<512x32xf32>
    %6 = arith.addf %3, %5 : vector<512x32xf32>
    %c0_5 = arith.constant 0 : index
    %c0_6 = arith.constant 0 : index
    %7 = vector.load %arg4[%c0_5, %c0_6] : memref<512x32xf32, #tpu.memory_space<vmem>>, vector<512x32xf32>
    tpu.vector_store %arg4[%c0_5, %c0_6], %6 {strides = array<i32>} : memref<512x32xf32, #tpu.memory_space<vmem>>, vector<512x32xf32>,
    return
  }
  func.func @transform_0(%arg0: i32) -> (i32, i32) {
    %c0_i32 = arith.constant 0 : i32
    %c0_i32_0 = arith.constant 0 : i32
    return %arg0, %c0_i32 : i32, i32
  }
  func.func @transform_1(%arg0: i32) -> (i32, i32) {
    %c0_i32 = arith.constant 0 : i32
    %c0_i32_0 = arith.constant 0 : i32
    %c0_i32_1 = arith.constant 0 : i32
    return %c0_i32, %c0_i32_0 : i32, i32
  }
  func.func @transform_2(%arg0: i32) -> (i32, i32) {
    %c0_i32 = arith.constant 0 : i32
    %c0_i32_0 = arith.constant 0 : i32
    %c0_i32_1 = arith.constant 0 : i32
    return %c0_i32, %c0_i32_0 : i32, i32
  }
  func.func @transform_3(%arg0: i32) -> (i32, i32) {
    %c0_i32 = arith.constant 0 : i32
    %c0_i32_0 = arith.constant 0 : i32
    return %arg0, %c0_i32 : i32, i32
  }
}

</mosaic_0001>

<llo_original>
// kernel: tpu_custom_call.1
$region0: #{tpu_custom_call.1}
  #allocation0 [shape = 'u32[]', space=smem, size = 0x4, offset = 0x4, fixed_abs, tag = 'smem constant byte address 0x4 - core index']
  #allocation1 [shape = 'u32[72,128]{1,0:T(1,128)}', space=vmem, size = 0x9000, scoped, tag = 'internal scratch']
  %s0 = inlined_call_operand.vmem [shape: f32[512,32], index: 0, kind: input, shape index: {}]
  %s1 = inlined_call_operand.vmem [shape: bf16[32,32], index: 1, kind: input, shape index: {}]
  %s2 = inlined_call_operand.vmem [shape: f32[1,32], index: 2, kind: input, shape index: {}]
  %s3 = inlined_call_operand.vmem [shape: f32[512,32], index: 3, kind: output, shape index: {}]
  %s4 = sld [smem:[#allocation0]]
  $region22: #{tpu_custom_call.1} parent=0
    _
  %s6 = ssub.s32 1, %s4
  %s7 = scalar_select 0, %s6, %s4
  // Predicated region
  $region2: #{tpu_custom_call.1} parent=0 // pred_check
    _
  $region3: #{tpu_custom_call.1} parent=0 // pred_check_branch
    %9 = sbr.rel (0) target = $region5
  $region4: #{tpu_custom_call.1} parent=0 // pred_region
    _
  $region5: #{tpu_custom_call.1} parent=0 // pred_fallthru
    _
  // Predicated region
  $region6: #{tpu_custom_call.1} parent=0 // pred_check
    _
  $region7: #{tpu_custom_call.1} parent=0 // pred_check_branch
    %11 = sbr.rel (0) target = $region9
  $region8: #{tpu_custom_call.1} parent=0 // pred_region
    _
  $region9: #{tpu_custom_call.1} parent=0 // pred_fallthru
    _
  // Predicated region
  $region10: #{tpu_custom_call.1} parent=0 // pred_check
    _
  $region11: #{tpu_custom_call.1} parent=0 // pred_check_branch
    %13 = sbr.rel (0) target = $region13
  $region12: #{tpu_custom_call.1} parent=0 // pred_region
    _
  $region13: #{tpu_custom_call.1} parent=0 // pred_fallthru
    _
  %v15 = vld [vmem:[%s0] sm:$0xff]
  %v16 = vld [vmem:[%s0 + $0x8] sm:$0xff]
  %v17 = vld [vmem:[%s0 + $0x10] sm:$0xff]
  %v18 = vld [vmem:[%s0 + $0x18] sm:$0xff]
  %v19 = vld [vmem:[%s0 + $0x20] sm:$0xff]
  %v20 = vld [vmem:[%s0 + $0x28] sm:$0xff]
  %v21 = vld [vmem:[%s0 + $0x30] sm:$0xff]
  %v22 = vld [vmem:[%s0 + $0x38] sm:$0xff]
  %v23 = vld [vmem:[%s0 + $0x40] sm:$0xff]
  %v24 = vld [vmem:[%s0 + $0x48] sm:$0xff]
  %v25 = vld [vmem:[%s0 + $0x50] sm:$0xff]
  %v26 = vld [vmem:[%s0 + $0x58] sm:$0xff]
  %v27 = vld [vmem:[%s0 + $0x60] sm:$0xff]
  %v28 = vld [vmem:[%s0 + $0x68] sm:$0xff]
  %v29 = vld [vmem:[%s0 + $0x70] sm:$0xff]
  %v30 = vld [vmem:[%s0 + $0x78] sm:$0xff]
  %v31 = vld [vmem:[%s0 + $0x80] sm:$0xff]
  %v32 = vld [vmem:[%s0 + $0x88] sm:$0xff]
  %v33 = vld [vmem:[%s0 + $0x90] sm:$0xff]
  %v34 = vld [vmem:[%s0 + $0x98] sm:$0xff]
  %v35 = vld [vmem:[%s0 + $0xa0] sm:$0xff]
  %v36 = vld [vmem:[%s0 + $0xa8] sm:$0xff]
  %v37 = vld [vmem:[%s0 + $0xb0] sm:$0xff]
  %v38 = vld [vmem:[%s0 + $0xb8] sm:$0xff]
  %v39 = vld [vmem:[%s0 + $0xc0] sm:$0xff]
  %v40 = vld [vmem:[%s0 + $0xc8] sm:$0xff]
  %v41 = vld [vmem:[%s0 + $0xd0] sm:$0xff]
  %v42 = vld [vmem:[%s0 + $0xd8] sm:$0xff]
  %v43 = vld [vmem:[%s0 + $0xe0] sm:$0xff]
  %v44 = vld [vmem:[%s0 + $0xe8] sm:$0xff]
  %v45 = vld [vmem:[%s0 + $0xf0] sm:$0xff]
  %v46 = vld [vmem:[%s0 + $0xf8] sm:$0xff]
  %v47 = vld [vmem:[%s0 + $0x100] sm:$0xff]
  %v48 = vld [vmem:[%s0 + $0x108] sm:$0xff]
  %v49 = vld [vmem:[%s0 + $0x110] sm:$0xff]
  %v50 = vld [vmem:[%s0 + $0x118] sm:$0xff]
  %v51 = vld [vmem:[%s0 + $0x120] sm:$0xff]
  %v52 = vld [vmem:[%s0 + $0x128] sm:$0xff]
  %v53 = vld [vmem:[%s0 + $0x130] sm:$0xff]
  %v54 = vld [vmem:[%s0 + $0x138] sm:$0xff]
  %v55 = vld [vmem:[%s0 + $0x140] sm:$0xff]
  %v56 = vld [vmem:[%s0 + $0x148] sm:$0xff]
  %v57 = vld [vmem:[%s0 + $0x150] sm:$0xff]
  %v58 = vld [vmem:[%s0 + $0x158] sm:$0xff]
  %v59 = vld [vmem:[%s0 + $0x160] sm:$0xff]
  %v60 = vld [vmem:[%s0 + $0x168] sm:$0xff]
  %v61 = vld [vmem:[%s0 + $0x170] sm:$0xff]
  %v62 = vld [vmem:[%s0 + $0x178] sm:$0xff]
  %v63 = vld [vmem:[%s0 + $0x180] sm:$0xff]
  %v64 = vld [vmem:[%s0 + $0x188] sm:$0xff]
  %v65 = vld [vmem:[%s0 + $0x190] sm:$0xff]
  %v66 = vld [vmem:[%s0 + $0x198] sm:$0xff]
  %v67 = vld [vmem:[%s0 + $0x1a0] sm:$0xff]
  %v68 = vld [vmem:[%s0 + $0x1a8] sm:$0xff]
  %v69 = vld [vmem:[%s0 + $0x1b0] sm:$0xff]
  %v70 = vld [vmem:[%s0 + $0x1b8] sm:$0xff]
  %v71 = vld [vmem:[%s0 + $0x1c0] sm:$0xff]
  %v72 = vld [vmem:[%s0 + $0x1c8] sm:$0xff]
  %v73 = vld [vmem:[%s0 + $0x1d0] sm:$0xff]
  %v74 = vld [vmem:[%s0 + $0x1d8] sm:$0xff]
  %v75 = vld [vmem:[%s0 + $0x1e0] sm:$0xff]
  %v76 = vld [vmem:[%s0 + $0x1e8] sm:$0xff]
  %v77 = vld [vmem:[%s0 + $0x1f0] sm:$0xff]
  %v78 = vld [vmem:[%s0 + $0x1f8] sm:$0xff]
  %v79 = vpack.c.bf16 %v16, %v15
  %v80 = vpack.c.bf16 %v18, %v17
  %v81 = vpack.c.bf16 %v20, %v19
  %v82 = vpack.c.bf16 %v22, %v21
  %v83 = vpack.c.bf16 %v24, %v23
  %v84 = vpack.c.bf16 %v26, %v25
  %v85 = vpack.c.bf16 %v28, %v27
  %v86 = vpack.c.bf16 %v30, %v29
  %v87 = vpack.c.bf16 %v32, %v31
  %v88 = vpack.c.bf16 %v34, %v33
  %v89 = vpack.c.bf16 %v36, %v35
  %v90 = vpack.c.bf16 %v38, %v37
  %v91 = vpack.c.bf16 %v40, %v39
  %v92 = vpack.c.bf16 %v42, %v41
  %v93 = vpack.c.bf16 %v44, %v43
  %v94 = vpack.c.bf16 %v46, %v45
  %v95 = vpack.c.bf16 %v48, %v47
  %v96 = vpack.c.bf16 %v50, %v49
  %v97 = vpack.c.bf16 %v52, %v51
  %v98 = vpack.c.bf16 %v54, %v53
  %v99 = vpack.c.bf16 %v56, %v55
  %v100 = vpack.c.bf16 %v58, %v57
  %v101 = vpack.c.bf16 %v60, %v59
  %v102 = vpack.c.bf16 %v62, %v61
  %v103 = vpack.c.bf16 %v64, %v63
  %v104 = vpack.c.bf16 %v66, %v65
  %v105 = vpack.c.bf16 %v68, %v67
  %v106 = vpack.c.bf16 %v70, %v69
  %v107 = vpack.c.bf16 %v72, %v71
  %v108 = vpack.c.bf16 %v74, %v73
  %v109 = vpack.c.bf16 %v76, %v75
  %v110 = vpack.c.bf16 %v78, %v77
  %v111 = vld [vmem:[%s1] sm:$0xf]
  %v112 = vld [vmem:[%s1 + $0x4] sm:$0xf]
  %v113 = vld [vmem:[%s1 + $0x8] sm:$0xf]
  %v114 = vld [vmem:[%s1 + $0xc] sm:$0xf]
  %v115 = vld [vmem:[%s2] sm:$0x1]
  %v117 = vperm.slane %v115, 0
  %v123 = vunpack.c.l.b16 %v111
  %v124 = vunpack.c.l.b16 %v112
  %v125 = vunpack.c.l.b16 %v113
  %v126 = vunpack.c.l.b16 %v114
  %v127 = vpack.c.b16 %v124, %v123
  %v128 = vpack.c.b16 %v126, %v125
  %vm131 = vcmask 261120
  %v133 = vsel %vm131, %v79, 0
  %v136 = vsel %vm131, %v80, 0
  %v139 = vsel %vm131, %v81, 0
  %v142 = vsel %vm131, %v82, 0
  %v145 = vsel %vm131, %v83, 0
  %v148 = vsel %vm131, %v84, 0
  %v151 = vsel %vm131, %v85, 0
  %v154 = vsel %vm131, %v86, 0
  %v157 = vsel %vm131, %v87, 0
  %v160 = vsel %vm131, %v88, 0
  %v163 = vsel %vm131, %v89, 0
  %v166 = vsel %vm131, %v90, 0
  %v169 = vsel %vm131, %v91, 0
  %v172 = vsel %vm131, %v92, 0
  %v175 = vsel %vm131, %v93, 0
  %v178 = vsel %vm131, %v94, 0
  %v181 = vsel %vm131, %v95, 0
  %v184 = vsel %vm131, %v96, 0
  %v187 = vsel %vm131, %v97, 0
  %v190 = vsel %vm131, %v98, 0
  %v193 = vsel %vm131, %v99, 0
  %v196 = vsel %vm131, %v100, 0
  %v199 = vsel %vm131, %v101, 0
  %v202 = vsel %vm131, %v102, 0
  %v205 = vsel %vm131, %v103, 0
  %v208 = vsel %vm131, %v104, 0
  %v211 = vsel %vm131, %v105, 0
  %v214 = vsel %vm131, %v106, 0
  %v217 = vsel %vm131, %v107, 0
  %v220 = vsel %vm131, %v108, 0
  %v223 = vsel %vm131, %v109, 0
  %v226 = vsel %vm131, %v110, 0
  %228 = vmatpush.bf16.msra.mxu0 0
  %229 = vmatpush.bf16.msra.mxu0 0
  %230 = vmatpush.bf16.msra.mxu0 0
  %231 = vmatpush.bf16.msra.mxu0 0
  %232 = vmatpush.bf16.msra.mxu0 0
  %233 = vmatpush.bf16.msra.mxu0 0
  %234 = vmatpush.bf16.msra.mxu0 %v128
  %235 = vmatpush.bf16.msra.mxu0 %v127
  %236 = vmatmul.bf16.gmra.mxu0 %v133
  %v237 = vpop.f32.mrf.mxu0
  %v238 = vadd.f32 %v117, %v237
  %v239 = vpop.f32.mrf.mxu0
  %v240 = vadd.f32 %v117, %v239
  %241 = vmatmul.bf16.gmra.mxu0 %v136
  %v242 = vpop.f32.mrf.mxu0
  %v243 = vadd.f32 %v117, %v242
  %v244 = vpop.f32.mrf.mxu0
  %v245 = vadd.f32 %v117, %v244
  %246 = vmatmul.bf16.gmra.mxu0 %v139
  %v247 = vpop.f32.mrf.mxu0
  %v248 = vadd.f32 %v117, %v247
  %v249 = vpop.f32.mrf.mxu0
  %v250 = vadd.f32 %v117, %v249
  %251 = vmatmul.bf16.gmra.mxu0 %v142
  %v252 = vpop.f32.mrf.mxu0
  %v253 = vadd.f32 %v117, %v252
  %v254 = vpop.f32.mrf.mxu0
  %v255 = vadd.f32 %v117, %v254
  %256 = vmatmul.bf16.gmra.mxu0 %v145
  %v257 = vpop.f32.mrf.mxu0
  %v258 = vadd.f32 %v117, %v257
  %v259 = vpop.f32.mrf.mxu0
  %v260 = vadd.f32 %v117, %v259
  %261 = vmatmul.bf16.gmra.mxu0 %v148
  %v262 = vpop.f32.mrf.mxu0
  %v263 = vadd.f32 %v117, %v262
  %v264 = vpop.f32.mrf.mxu0
  %v265 = vadd.f32 %v117, %v264
  %266 = vmatmul.bf16.gmra.mxu0 %v151
  %v267 = vpop.f32.mrf.mxu0
  %v268 = vadd.f32 %v117, %v267
  %v269 = vpop.f32.mrf.mxu0
  %v270 = vadd.f32 %v117, %v269
  %271 = vmatmul.bf16.gmra.mxu0 %v154
  %v272 = vpop.f32.mrf.mxu0
  %v273 = vadd.f32 %v117, %v272
  %v274 = vpop.f32.mrf.mxu0
  %v275 = vadd.f32 %v117, %v274
  %276 = vmatmul.bf16.gmra.mxu0 %v157
  %v277 = vpop.f32.mrf.mxu0
  %v278 = vadd.f32 %v117, %v277
  %v279 = vpop.f32.mrf.mxu0
  %v280 = vadd.f32 %v117, %v279
  %281 = vmatmul.bf16.gmra.mxu0 %v160
  %v282 = vpop.f32.mrf.mxu0
  %v283 = vadd.f32 %v117, %v282
  %v284 = vpop.f32.mrf.mxu0
  %v285 = vadd.f32 %v117, %v284
  %286 = vmatmul.bf16.gmra.mxu0 %v163
  %v287 = vpop.f32.mrf.mxu0
  %v288 = vadd.f32 %v117, %v287
  %v289 = vpop.f32.mrf.mxu0
  %v290 = vadd.f32 %v117, %v289
  %291 = vmatmul.bf16.gmra.mxu0 %v166
  %v292 = vpop.f32.mrf.mxu0
  %v293 = vadd.f32 %v117, %v292
  %v294 = vpop.f32.mrf.mxu0
  %v295 = vadd.f32 %v117, %v294
  %296 = vmatmul.bf16.gmra.mxu0 %v169
  %v297 = vpop.f32.mrf.mxu0
  %v298 = vadd.f32 %v117, %v297
  %v299 = vpop.f32.mrf.mxu0
  %v300 = vadd.f32 %v117, %v299
  %301 = vmatmul.bf16.gmra.mxu0 %v172
  %v302 = vpop.f32.mrf.mxu0
  %v303 = vadd.f32 %v117, %v302
  %v304 = vpop.f32.mrf.mxu0
  %v305 = vadd.f32 %v117, %v304
  %306 = vmatmul.bf16.gmra.mxu0 %v175
  %v307 = vpop.f32.mrf.mxu0
  %v308 = vadd.f32 %v117, %v307
  %v309 = vpop.f32.mrf.mxu0
  %v310 = vadd.f32 %v117, %v309
  %311 = vmatmul.bf16.gmra.mxu0 %v178
  %v312 = vpop.f32.mrf.mxu0
  %v313 = vadd.f32 %v117, %v312
  %v314 = vpop.f32.mrf.mxu0
  %v315 = vadd.f32 %v117, %v314
  %316 = vmatmul.bf16.gmra.mxu0 %v181
  %v317 = vpop.f32.mrf.mxu0
  %v318 = vadd.f32 %v117, %v317
  %v319 = vpop.f32.mrf.mxu0
  %v320 = vadd.f32 %v117, %v319
  %321 = vmatmul.bf16.gmra.mxu0 %v184
  %v322 = vpop.f32.mrf.mxu0
  %v323 = vadd.f32 %v117, %v322
  %v324 = vpop.f32.mrf.mxu0
  %v325 = vadd.f32 %v117, %v324
  %326 = vmatmul.bf16.gmra.mxu0 %v187
  %v327 = vpop.f32.mrf.mxu0
  %v328 = vadd.f32 %v117, %v327
  %v329 = vpop.f32.mrf.mxu0
  %v330 = vadd.f32 %v117, %v329
  %331 = vmatmul.bf16.gmra.mxu0 %v190
  %v332 = vpop.f32.mrf.mxu0
  %v333 = vadd.f32 %v117, %v332
  %v334 = vpop.f32.mrf.mxu0
  %v335 = vadd.f32 %v117, %v334
  %336 = vmatmul.bf16.gmra.mxu0 %v193
  %v337 = vpop.f32.mrf.mxu0
  %v338 = vadd.f32 %v117, %v337
  %v339 = vpop.f32.mrf.mxu0
  %v340 = vadd.f32 %v117, %v339
  %341 = vmatmul.bf16.gmra.mxu0 %v196
  %v342 = vpop.f32.mrf.mxu0
  %v343 = vadd.f32 %v117, %v342
  %v344 = vpop.f32.mrf.mxu0
  %v345 = vadd.f32 %v117, %v344
  %346 = vmatmul.bf16.gmra.mxu0 %v199
  %v347 = vpop.f32.mrf.mxu0
  %v348 = vadd.f32 %v117, %v347
  %v349 = vpop.f32.mrf.mxu0
  %v350 = vadd.f32 %v117, %v349
  %351 = vmatmul.bf16.gmra.mxu0 %v202
  %v352 = vpop.f32.mrf.mxu0
  %v353 = vadd.f32 %v117, %v352
  %v354 = vpop.f32.mrf.mxu0
  %v355 = vadd.f32 %v117, %v354
  %356 = vmatmul.bf16.gmra.mxu0 %v205
  %v357 = vpop.f32.mrf.mxu0
  %v358 = vadd.f32 %v117, %v357
  %v359 = vpop.f32.mrf.mxu0
  %v360 = vadd.f32 %v117, %v359
  %361 = vmatmul.bf16.gmra.mxu0 %v208
  %v362 = vpop.f32.mrf.mxu0
  %v363 = vadd.f32 %v117, %v362
  %v364 = vpop.f32.mrf.mxu0
  %v365 = vadd.f32 %v117, %v364
  %366 = vmatmul.bf16.gmra.mxu0 %v211
  %v367 = vpop.f32.mrf.mxu0
  %v368 = vadd.f32 %v117, %v367
  %v369 = vpop.f32.mrf.mxu0
  %v370 = vadd.f32 %v117, %v369
  %371 = vmatmul.bf16.gmra.mxu0 %v214
  %v372 = vpop.f32.mrf.mxu0
  %v373 = vadd.f32 %v117, %v372
  %v374 = vpop.f32.mrf.mxu0
  %v375 = vadd.f32 %v117, %v374
  %376 = vmatmul.bf16.gmra.mxu0 %v217
  %v377 = vpop.f32.mrf.mxu0
  %v378 = vadd.f32 %v117, %v377
  %v379 = vpop.f32.mrf.mxu0
  %v380 = vadd.f32 %v117, %v379
  %381 = vmatmul.bf16.gmra.mxu0 %v220
  %v382 = vpop.f32.mrf.mxu0
  %v383 = vadd.f32 %v117, %v382
  %v384 = vpop.f32.mrf.mxu0
  %v385 = vadd.f32 %v117, %v384
  %386 = vmatmul.bf16.gmra.mxu0 %v223
  %v387 = vpop.f32.mrf.mxu0
  %v388 = vadd.f32 %v117, %v387
  %v389 = vpop.f32.mrf.mxu0
  %v390 = vadd.f32 %v117, %v389
  %391 = vmatmul.bf16.gmra.mxu0 %v226
  %v392 = vpop.f32.mrf.mxu0
  %v393 = vadd.f32 %v117, %v392
  %v394 = vpop.f32.mrf.mxu0
  %v395 = vadd.f32 %v117, %v394
  %396 = vdwg.mxu0
  %397 = vst.msk [vmem:[%s3] sm:$0xff] %vm131, %v238
  %398 = vst.msk [vmem:[%s3 + $0x8] sm:$0xff] %vm131, %v240
  %399 = vst.msk [vmem:[%s3 + $0x10] sm:$0xff] %vm131, %v243
  %400 = vst.msk [vmem:[%s3 + $0x18] sm:$0xff] %vm131, %v245
  %401 = vst.msk [vmem:[%s3 + $0x20] sm:$0xff] %vm131, %v248
  %402 = vst.msk [vmem:[%s3 + $0x28] sm:$0xff] %vm131, %v250
  %403 = vst.msk [vmem:[%s3 + $0x30] sm:$0xff] %vm131, %v253
  %404 = vst.msk [vmem:[%s3 + $0x38] sm:$0xff] %vm131, %v255
  %405 = vst.msk [vmem:[%s3 + $0x40] sm:$0xff] %vm131, %v258
  %406 = vst.msk [vmem:[%s3 + $0x48] sm:$0xff] %vm131, %v260
  %407 = vst.msk [vmem:[%s3 + $0x50] sm:$0xff] %vm131, %v263
  %408 = vst.msk [vmem:[%s3 + $0x58] sm:$0xff] %vm131, %v265
  %409 = vst.msk [vmem:[%s3 + $0x60] sm:$0xff] %vm131, %v268
  %410 = vst.msk [vmem:[%s3 + $0x68] sm:$0xff] %vm131, %v270
  %411 = vst.msk [vmem:[%s3 + $0x70] sm:$0xff] %vm131, %v273
  %412 = vst.msk [vmem:[%s3 + $0x78] sm:$0xff] %vm131, %v275
  %413 = vst.msk [vmem:[%s3 + $0x80] sm:$0xff] %vm131, %v278
  %414 = vst.msk [vmem:[%s3 + $0x88] sm:$0xff] %vm131, %v280
  %415 = vst.msk [vmem:[%s3 + $0x90] sm:$0xff] %vm131, %v283
  %416 = vst.msk [vmem:[%s3 + $0x98] sm:$0xff] %vm131, %v285
  %417 = vst.msk [vmem:[%s3 + $0xa0] sm:$0xff] %vm131, %v288
  %418 = vst.msk [vmem:[%s3 + $0xa8] sm:$0xff] %vm131, %v290
  %419 = vst.msk [vmem:[%s3 + $0xb0] sm:$0xff] %vm131, %v293
  %420 = vst.msk [vmem:[%s3 + $0xb8] sm:$0xff] %vm131, %v295
  %421 = vst.msk [vmem:[%s3 + $0xc0] sm:$0xff] %vm131, %v298
  %422 = vst.msk [vmem:[%s3 + $0xc8] sm:$0xff] %vm131, %v300
  %423 = vst.msk [vmem:[%s3 + $0xd0] sm:$0xff] %vm131, %v303
  %424 = vst.msk [vmem:[%s3 + $0xd8] sm:$0xff] %vm131, %v305
  %425 = vst.msk [vmem:[%s3 + $0xe0] sm:$0xff] %vm131, %v308
  %426 = vst.msk [vmem:[%s3 + $0xe8] sm:$0xff] %vm131, %v310
  %427 = vst.msk [vmem:[%s3 + $0xf0] sm:$0xff] %vm131, %v313
  %428 = vst.msk [vmem:[%s3 + $0xf8] sm:$0xff] %vm131, %v315
  %429 = vst.msk [vmem:[%s3 + $0x100] sm:$0xff] %vm131, %v318
  %430 = vst.msk [vmem:[%s3 + $0x108] sm:$0xff] %vm131, %v320
  %431 = vst.msk [vmem:[%s3 + $0x110] sm:$0xff] %vm131, %v323
  %432 = vst.msk [vmem:[%s3 + $0x118] sm:$0xff] %vm131, %v325
  %433 = vst.msk [vmem:[%s3 + $0x120] sm:$0xff] %vm131, %v328
  %434 = vst.msk [vmem:[%s3 + $0x128] sm:$0xff] %vm131, %v330
  %435 = vst.msk [vmem:[%s3 + $0x130] sm:$0xff] %vm131, %v333
  %436 = vst.msk [vmem:[%s3 + $0x138] sm:$0xff] %vm131, %v335
  %437 = vst.msk [vmem:[%s3 + $0x140] sm:$0xff] %vm131, %v338
  %438 = vst.msk [vmem:[%s3 + $0x148] sm:$0xff] %vm131, %v340
  %439 = vst.msk [vmem:[%s3 + $0x150] sm:$0xff] %vm131, %v343
  %440 = vst.msk [vmem:[%s3 + $0x158] sm:$0xff] %vm131, %v345
  %441 = vst.msk [vmem:[%s3 + $0x160] sm:$0xff] %vm131, %v348
  %442 = vst.msk [vmem:[%s3 + $0x168] sm:$0xff] %vm131, %v350
  %443 = vst.msk [vmem:[%s3 + $0x170] sm:$0xff] %vm131, %v353
  %444 = vst.msk [vmem:[%s3 + $0x178] sm:$0xff] %vm131, %v355
  %445 = vst.msk [vmem:[%s3 + $0x180] sm:$0xff] %vm131, %v358
  %446 = vst.msk [vmem:[%s3 + $0x188] sm:$0xff] %vm131, %v360
  %447 = vst.msk [vmem:[%s3 + $0x190] sm:$0xff] %vm131, %v363
  %448 = vst.msk [vmem:[%s3 + $0x198] sm:$0xff] %vm131, %v365
  %449 = vst.msk [vmem:[%s3 + $0x1a0] sm:$0xff] %vm131, %v368
  %450 = vst.msk [vmem:[%s3 + $0x1a8] sm:$0xff] %vm131, %v370
  %451 = vst.msk [vmem:[%s3 + $0x1b0] sm:$0xff] %vm131, %v373
  %452 = vst.msk [vmem:[%s3 + $0x1b8] sm:$0xff] %vm131, %v375
  %453 = vst.msk [vmem:[%s3 + $0x1c0] sm:$0xff] %vm131, %v378
  %454 = vst.msk [vmem:[%s3 + $0x1c8] sm:$0xff] %vm131, %v380
  %455 = vst.msk [vmem:[%s3 + $0x1d0] sm:$0xff] %vm131, %v383
  %456 = vst.msk [vmem:[%s3 + $0x1d8] sm:$0xff] %vm131, %v385
  %457 = vst.msk [vmem:[%s3 + $0x1e0] sm:$0xff] %vm131, %v388
  %458 = vst.msk [vmem:[%s3 + $0x1e8] sm:$0xff] %vm131, %v390
  %459 = vst.msk [vmem:[%s3 + $0x1f0] sm:$0xff] %vm131, %v393
  %460 = vst.msk [vmem:[%s3 + $0x1f8] sm:$0xff] %vm131, %v395
  // Predicated region
  $region14: #{tpu_custom_call.1} parent=0 // pred_check
    _
  $region15: #{tpu_custom_call.1} parent=0 // pred_check_branch
    %462 = sbr.rel (0) target = $region17
  $region16: #{tpu_custom_call.1} parent=0 // pred_region
    _
  $region17: #{tpu_custom_call.1} parent=0 // pred_fallthru
    _
  // Predicated region
  $region18: #{tpu_custom_call.1} parent=0 // pred_check
    _
  $region19: #{tpu_custom_call.1} parent=0 // pred_check_branch
    %464 = sbr.rel (0) target = $region21
  $region20: #{tpu_custom_call.1} parent=0 // pred_region
    _
  $region21: #{tpu_custom_call.1} parent=0 // pred_fallthru
    _

</llo_original>
